<compile_context>
chip_gen: v5e
topology: v5e:2x2
jax: 0.10.0
libtpu: 0.0.40
codegen_flags: <defaults>
</compile_context>

<pallas_src>
import jax
import jax.numpy as jnp
import numpy as np
from jax.experimental import pallas as pl
from jax.experimental.pallas import tpu as pltpu

_LANE = 128
_SUB = 8


# ---------------------------------------------------------------------------
# Pallas kernel: out[r, :] = x[r, :] + add[r]
# ---------------------------------------------------------------------------
def _sa_gc_add_kernel(x_ref, add_ref, o_ref):
    # HBM-bound broadcast add.  Arithmetic in f32 (VPU has huge slack here) and a single
    # cast on the way out, so bf16 inputs only pay the final rounding.
    o_ref[...] = (x_ref[...].astype(jnp.float32) + add_ref[...]).astype(o_ref.dtype)


# ---------------------------------------------------------------------------
# Constant channel-add term (parameter-only; context == 0 for finite x).
# ---------------------------------------------------------------------------
def _channel_add_vector(params):
    C = params["w2"].shape[0]
    context = jnp.zeros((C,), jnp.float32)                       # exact: x @ 0
    h = context @ params["w1t"] + params["b1"][0]                # == b1, shape (P,)
    mu = jnp.mean(h)
    var = jnp.mean((h - mu) ** 2)
    hn = (h - mu) / jnp.sqrt(var + 1e-5) * params["gamma"][0] + params["beta"][0]
    hr = jnp.maximum(hn, 0.0)
    return hr @ params["w2"].T + params["b2"][:, 0]              # (C,), float32


# ---------------------------------------------------------------------------
# Tiling helpers
# ---------------------------------------------------------------------------
def _default_target_block_bytes():
    """Bytes of x per grid step, scaled with HBM bandwidth per generation."""
    try:
        kind = jax.devices()[0].device_kind.lower()
    except Exception:
        kind = ""
    if "v7" in kind or "7x" in kind:
        return 6 << 20
    if "v6" in kind:
        return 3 << 20
    if any(v in kind for v in ("v5", "v4", "v3", "v2")):
        return 1 << 20
    return 2 << 20


def _choose_tiles(R, HW, itemsize, target_bytes):
    """Pick (row_tile, col_tile) obeying the (8,128) constraint, ~target_bytes per block."""
    max_elems = max(_SUB * _LANE, target_bytes // itemsize)

    # Lane (column) tile: full HW when a >=8-row block still fits the budget,
    # otherwise the largest lane-multiple slice that does.
    if HW <= _LANE or _SUB * HW <= max_elems:
        col_tile = HW
    else:
        col_tile = max(_LANE, (max_elems // _SUB) // _LANE * _LANE)
        col_tile = min(col_tile, (HW // _LANE) * _LANE)

    # Sublane (row) tile: multiple of 8 (or all rows when there are fewer than 8).
    if R <= _SUB:
        row_tile = R
    else:
        rows = max(_SUB, (max_elems // max(col_tile, 1)) // _SUB * _SUB)
        row_tile = min(R, rows)

    # Megacore (v7x): guarantee at least two grid steps whenever the rows can be split.
    if pl.cdiv(R, row_tile) * pl.cdiv(HW, col_tile) == 1 and R > _SUB:
        row_tile = max(_SUB, pl.cdiv(pl.cdiv(R, 2), _SUB) * _SUB)

    return row_tile, col_tile


def _vmem_block_bytes(row_tile, col_tile, itemsize):
    """VMEM footprint of the pipeline buffers, from *padded* block shapes."""
    rpad = pl.cdiv(row_tile, _SUB) * _SUB
    cpad = pl.cdiv(col_tile, _LANE) * _LANE
    x_blk = rpad * cpad * itemsize
    add_blk = rpad * _LANE * 4                 # (row_tile, 1) f32, lane-padded
    return 2 * (2 * x_blk + add_blk)           # double-buffered x + out + add


# ---------------------------------------------------------------------------
# Forward
# ---------------------------------------------------------------------------
def sa_gc_forward(x, params, *, target_block_bytes=None, min_pallas_bytes=256 << 10):
    B, C, H, W = x.shape
    HW = H * W
    R = B * C
    dtype = x.dtype
    itemsize = jnp.dtype(dtype).itemsize

    add = _channel_add_vector(params)                            # (C,) f32

    # Tiny activations: fixed pallas_call / per-step overhead dominates; XLA's fused
    # broadcast add is already at the HBM roofline.
    if R * HW * itemsize < min_pallas_bytes:
        return (x.astype(jnp.float32) + add[None, :, None, None]).astype(dtype)

    if target_block_bytes is None:
        target_block_bytes = _default_target_block_bytes()

    # Zero-copy row view of contiguous NCHW: row r = b*C + c needs add[c], carried as a
    # tiny (B*C, 1) f32 operand.  No CHW-sized repeat, no jnp.pad, no output slice.
    x2 = x.reshape(R, HW)
    add_rows = jnp.tile(add, B)[:, None]                         # (R, 1), ~R*4 bytes

    row_tile, col_tile = _choose_tiles(R, HW, itemsize, target_block_bytes)
    grid = (pl.cdiv(R, row_tile), pl.cdiv(HW, col_tile))

    vmem_needed = _vmem_block_bytes(row_tile, col_tile, itemsize)
    vmem_limit = int(min(max(16 << 20, vmem_needed + (8 << 20)), 48 << 20))

    out2 = pl.pallas_call(
        _sa_gc_add_kernel,
        out_shape=jax.ShapeDtypeStruct((R, HW), dtype),
        grid_spec=pltpu.PrefetchScalarGridSpec(
            num_scalar_prefetch=0,
            grid=grid,
            in_specs=[
                pl.BlockSpec((row_tile, col_tile), lambda ri, ci: (ri, ci)),  # x rows
                pl.BlockSpec((row_tile, 1), lambda ri, ci: (ri, 0)),          # per-row add
            ],
            out_specs=pl.BlockSpec((row_tile, col_tile), lambda ri, ci: (ri, ci)),
        ),
        compiler_params=pltpu.CompilerParams(
            dimension_semantics=("parallel", "parallel"),
            vmem_limit_bytes=vmem_limit,
        ),
    )(x2, add_rows)

    return out2.reshape(B, C, H, W)


# ---------------------------------------------------------------------------
# Pure-JAX reference mirroring the PyTorch forward exactly (incl. the dead softmax).
# ---------------------------------------------------------------------------
def sa_gc_reference(x, p):
    B, C, H, W = x.shape
    HW = H * W
    xr = x.reshape(B, C, HW)
    logits = jnp.einsum("c,bch->bh", p["wm"][:, 0], xr) + p["bm"][0, 0]
    logits = logits[:, None, :]                                  # (B, 1, HW)
    lsm = jax.nn.log_softmax(logits, axis=1)                     # dim=1, size 1 -> 0
    context = jnp.einsum("bch,bxh->bc", xr, lsm)                 # (B, C)
    h = context @ p["w1t"] + p["b1"][0]                          # (B, P)
    mu = jnp.mean(h, axis=1, keepdims=True)
    var = jnp.mean((h - mu) ** 2, axis=1, keepdims=True)
    hn = (h - mu) / jnp.sqrt(var + 1e-5) * p["gamma"][0] + p["beta"][0]
    hr = jnp.maximum(hn, 0.0)
    add = hr @ p["w2"].T + p["b2"][:, 0]                         # (B, C)
    return x + add[:, :, None, None]


def init_params(key, inplanes=64, ratio=0.5):
    C = inplanes
    P = int(inplanes * ratio)
    ks = jax.random.split(key, 6)
    s = lambda fan_in: 1.0 / np.sqrt(fan_in)
    return {
        # conv_mask: torch weight (1, C, 1, 1) -> stored as (C, 1)
        "wm": jax.random.uniform(ks[0], (C, 1), jnp.float32, -s(C), s(C)),
        "bm": jax.random.uniform(ks[1], (1, 1), jnp.float32, -s(C), s(C)),
        # channel_add_conv[0]: torch weight (P, C, 1, 1) -> stored transposed (C, P)
        "w1t": jax.random.uniform(ks[2], (C, P), jnp.float32, -s(C), s(C)),
        "b1": jax.random.uniform(ks[3], (1, P), jnp.float32, -s(C), s(C)),
        # LayerNorm([P,1,1]) default init
        "gamma": jnp.ones((1, P), jnp.float32),
        "beta": jnp.zeros((1, P), jnp.float32),
        # channel_add_conv[3]: torch weight (C, P, 1, 1) -> stored as (C, P)
        "w2": jax.random.uniform(ks[4], (C, P), jnp.float32, -s(P), s(P)),
        "b2": jax.random.uniform(ks[5], (C, 1), jnp.float32, -s(P), s(P)),
    }


if __name__ == "__main__":
    # Force true-f32 matmuls so the (tiny) reference and the hoisted param-only add term
    # agree to float32 precision.
    jax.config.update("jax_default_matmul_precision", "highest")

    key = jax.random.PRNGKey(0)
    kx1, kx2, kx3, kp = jax.random.split(key, 4)

    C = 64                                  # inplanes=64 (module default), ratio=0.5 -> planes=32
    params = init_params(kp, inplanes=C, ratio=0.5)

    # 1) Main path: Pallas broadcast-add kernel (512 KiB of f32 activations).
    x1 = jax.random.normal(kx1, (2, C, 32, 32), jnp.float32)
    out1 = jax.block_until_ready(sa_gc_forward(x1, params))
    np.testing.assert_allclose(np.asarray(out1), np.asarray(sa_gc_reference(x1, params)),
                               rtol=1e-5, atol=1e-5)

    # 2) Non-lane-multiple spatial size (HW=100): exercises the pad-free partial-block path.
    x2 = jax.random.normal(kx2, (2, C, 10, 10), jnp.float32)
    out2 = jax.block_until_ready(sa_gc_forward(x2, params, min_pallas_bytes=0))
    np.testing.assert_allclose(np.asarray(out2), np.asarray(sa_gc_reference(x2, params)),
                               rtol=1e-5, atol=1e-5)

    # 3) Tiny input: default fast path (plain XLA fused add, no pallas_call overhead).
    x3 = jax.random.normal(kx3, (1, C, 4, 4), jnp.float32)
    out3 = jax.block_until_ready(sa_gc_forward(x3, params))
    np.testing.assert_allclose(np.asarray(out3), np.asarray(sa_gc_reference(x3, params)),
                               rtol=1e-5, atol=1e-5)

    print("KERNEL_OK")
</pallas_src>

<mosaic_0001>
module attributes {stable_mosaic.version = 11 : i64} {
  func.func @_sa_gc_add_kernel(%arg0: i32, %arg1: i32, %arg2: memref<64x1024xf32, #tpu.memory_space<vmem>>, %arg3: memref<64x1xf32, #tpu.memory_space<vmem>>, %arg4: memref<64x1024xf32, #tpu.memory_space<vmem>>) attributes {dimension_semantics = [#tpu.dimension_semantics<parallel>, #tpu.dimension_semantics<parallel>], iteration_bounds = array<i64: 2, 1>, scalar_prefetch = 0 : i64, scratch_operands = 0 : i64, tpu.core_type = #tpu.core_type<tc>, window_params = [{transform_indices = @transform_0, window_bounds = array<i64: 64, 1024>}, {transform_indices = @transform_1, window_bounds = array<i64: 64, 1>}, {transform_indices = @transform_2, window_bounds = array<i64: 64, 1024>}]} {
    %c0 = arith.constant 0 : index
    %c0_0 = arith.constant 0 : index
    %0 = vector.load %arg2[%c0, %c0_0] : memref<64x1024xf32, #tpu.memory_space<vmem>>, vector<64x1024xf32>
    %c0_1 = arith.constant 0 : index
    %c0_2 = arith.constant 0 : index
    %1 = vector.load %arg3[%c0_1, %c0_2] : memref<64x1xf32, #tpu.memory_space<vmem>>, vector<64x1xf32>
    %2 = vector.broadcast %1 : vector<64x1xf32> to vector<64x1024xf32>
    %3 = arith.addf %0, %2 : vector<64x1024xf32>
    %c0_3 = arith.constant 0 : index
    %c0_4 = arith.constant 0 : index
    %4 = vector.load %arg4[%c0_3, %c0_4] : memref<64x1024xf32, #tpu.memory_space<vmem>>, vector<64x1024xf32>
    tpu.vector_store %arg4[%c0_3, %c0_4], %3 {strides = array<i32>} : memref<64x1024xf32, #tpu.memory_space<vmem>>, vector<64x1024xf32>,
    return
  }
  func.func @transform_0(%arg0: i32, %arg1: i32) -> (i32, i32) {
    %c0_i32 = arith.constant 0 : i32
    return %arg0, %arg1 : i32, i32
  }
  func.func @transform_1(%arg0: i32, %arg1: i32) -> (i32, i32) {
    %c0_i32 = arith.constant 0 : i32
    %c0_i32_0 = arith.constant 0 : i32
    return %arg0, %c0_i32 : i32, i32
  }
  func.func @transform_2(%arg0: i32, %arg1: i32) -> (i32, i32) {
    %c0_i32 = arith.constant 0 : i32
    return %arg0, %arg1 : i32, i32
  }
}

</mosaic_0001>

<llo_original>
// kernel: tpu_custom_call.1
$region0: #{tpu_custom_call.1}
  #allocation0 [shape = 'u32[]', space=smem, size = 0x4, offset = 0x4, fixed_abs, tag = 'smem constant byte address 0x4 - core index']
  #allocation1 [shape = 'u32[72,128]{1,0:T(1,128)}', space=vmem, size = 0x9000, scoped, tag = 'internal scratch']
  %s0 = inlined_call_operand.hbm [shape: f32[128,1024], index: 0, kind: input, shape index: {}]
  %s1 = inlined_call_operand.vmem [shape: f32[128,1], index: 1, kind: input, shape index: {}]
  %s2 = inlined_call_operand.hbm [shape: f32[128,1024], index: 2, kind: output, shape index: {}]
  %s3 = sld [smem:[#allocation0]]
  $region45: #{tpu_custom_call.1} parent=0
    _
  %s5 = ssub.s32 1, %s3
  %s6 = scalar_select 0, %s5, %s3
  $region1: #{tpu_custom_call.1} parent=0
    #allocation2 [shape = 'u8[524288]{0}', space=vmem, size = 0x80000, scoped, tag = 'input window, operand 0']
    #allocation3 [shape = 's32[2]{0}', space=sflag, size = 0x8, scoped, tag = 'scoped memory for tpu_custom_call.1']
    #allocation4 [shape = 's32[2]{0}', space=sflag, size = 0x8, scoped, tag = 'scoped memory for tpu_custom_call.1']
    #allocation5 [shape = 'u8[524288]{0}', space=vmem, size = 0x80000, scoped, tag = 'output window, operand 0']
    %7 = vsyncpa [#allocation3], 0
    %s8 = scalar_lea.sflag [#allocation3], 1
    %9 = vsyncpa %s8, 0
    %10 = vsyncpa [#allocation4], 0
    %s11 = scalar_lea.sflag [#allocation4], 1
    %12 = vsyncpa %s11, 0
    loop: start=0, step=1, limit=4
    $region2: #{tpu_custom_call.1} parent=1 // loop_pre_header
      _
    $region3: #{tpu_custom_call.1} parent=1 // loop_header
      %s14 = sphi 0, %s18
      %p15 = scmp.ge.s32.totalorder %s14, 4
      %s21 = sphi 0, %s33
      %s22 = sphi 0, %s29
      %s23 = sphi 0, %s21
      %s24 = sphi 0, %s22
      %s25 = sphi 0, %s23
      %s26 = sphi 0, %s24
      %s38 = sphi 0, %s40
      %s41 = sphi 0, %s38
      %s42 = sphi 0, %s41
      %s58 = sphi 0, %s42
      %s64 = sphi 0, %s66
      %s67 = sphi 0, %s64
      %s68 = sphi 0, %s67
      %s84 = sphi 0, %s68
      %s92 = sphi 0, %s94
      %s95 = sphi 0, %s92
      %s96 = sphi 0, %s95
      %s112 = sphi 0, %s96
    $region4: #{tpu_custom_call.1} parent=1 // loop_header_branch
      %17 = sbr.rel (%p15) target = $region8
    $region5: #{tpu_custom_call.1} parent=1 // loop_body
      %s19 = ssub.s32 %s14, 1
      %s20 = ssub.s32 %s14, 2
      %s27 = sadd.s32 1, %s22
      %p28 = scmp.ge.s32.totalorder %s27, 1
      %s29 = scalar_select %p28, 0, %s27
      %s30 = sadd.s32 1, %s21
      %s31 = scalar_select %p28, %s30, %s21
      %p32 = scmp.ge.s32.totalorder %s31, 2
      %s33 = scalar_select %p32, 0, %s31
      %s34 = ssub.s32 %s21, %s33
      %s35 = ssub.s32 %s22, %s29
      %s36 = sor.u32 %s34, %s35
      %p37 = scmp.eq.s32.totalorder %s36, 0
      %s39 = sadd.s32 %s38, 1
      %s40 = scalar_select %p37, %s38, %s39
      %p43 = pneg %p37
      %p44 = scmp.eq.s32.totalorder %s14, 1
      %p45 = por %p43, %p44
      %p46 = scmp.ne.s32.totalorder %s38, %s41
      %p47 = scmp.eq.s32.totalorder %s14, 0
      %p48 = por %p46, %p47
      %p49 = scmp.ne.s32.totalorder %s38, %s41
      %p50 = scmp.eq.s32.totalorder %s19, 1
      %p51 = por %p49, %p50
      %p52 = scmp.ne.s32.totalorder %s41, %s42
      %p53 = scmp.eq.s32.totalorder %s19, 0
      %p54 = por %p52, %p53
      %p55 = scmp.ne.s32.totalorder %s41, %s42
      %p56 = scmp.eq.s32.totalorder %s20, 1
      %p57 = por %p55, %p56
      %p59 = scmp.ne.s32.totalorder %s42, %s58
      %p60 = scmp.eq.s32.totalorder %s20, 0
      %p61 = por %p59, %p60
      %s62 = ssub.s32 %s21, %s33
      %p63 = scmp.eq.s32.totalorder %s62, 0
      %s65 = sadd.s32 %s64, 1
      %s66 = scalar_select %p63, %s64, %s65
      %p69 = pneg %p63
      %p70 = scmp.eq.s32.totalorder %s14, 1
      %p71 = por %p69, %p70
      %p72 = scmp.ne.s32.totalorder %s64, %s67
      %p73 = scmp.eq.s32.totalorder %s14, 0
      %p74 = por %p72, %p73
      %p75 = scmp.ne.s32.totalorder %s64, %s67
      %p76 = scmp.eq.s32.totalorder %s19, 1
      %p77 = por %p75, %p76
      %p78 = scmp.ne.s32.totalorder %s67, %s68
      %p79 = scmp.eq.s32.totalorder %s19, 0
      %p80 = por %p78, %p79
      %p81 = scmp.ne.s32.totalorder %s67, %s68
      %p82 = scmp.eq.s32.totalorder %s20, 1
      %p83 = por %p81, %p82
      %p85 = scmp.ne.s32.totalorder %s68, %s84
      %p86 = scmp.eq.s32.totalorder %s20, 0
      %p87 = por %p85, %p86
      %s88 = ssub.s32 %s21, %s33
      %s89 = ssub.s32 %s22, %s29
      %s90 = sor.u32 %s88, %s89
      %p91 = scmp.eq.s32.totalorder %s90, 0
      %s93 = sadd.s32 %s92, 1
      %s94 = scalar_select %p91, %s92, %s93
      %p97 = pneg %p91
      %p98 = scmp.eq.s32.totalorder %s14, 1
      %p99 = por %p97, %p98
      %p100 = scmp.ne.s32.totalorder %s92, %s95
      %p101 = scmp.eq.s32.totalorder %s14, 0
      %p102 = por %p100, %p101
      %p103 = scmp.ne.s32.totalorder %s92, %s95
      %p104 = scmp.eq.s32.totalorder %s19, 1
      %p105 = por %p103, %p104
      %p106 = scmp.ne.s32.totalorder %s95, %s96
      %p107 = scmp.eq.s32.totalorder %s19, 0
      %p108 = por %p106, %p107
      %p109 = scmp.ne.s32.totalorder %s95, %s96
      %p110 = scmp.eq.s32.totalorder %s20, 1
      %p111 = por %p109, %p110
      %p113 = scmp.ne.s32.totalorder %s96, %s112
      %p114 = scmp.eq.s32.totalorder %s20, 0
      %p115 = por %p113, %p114
      %p116 = scmp.le.s32.totalorder 1, %s14
      %p117 = scmp.lt.s32.totalorder %s14, 3
      %p118 = pnand %p116, %p117
      %p119 = pneg %p118
      // Predicated region
      $region9: #{tpu_custom_call.1} parent=5 // pred_check
        _
      $region10: #{tpu_custom_call.1} parent=5 // pred_check_branch
        %121 = sbr.rel (%p118) target = $region12
      $region11: #{tpu_custom_call.1} parent=5 // pred_region
        %s122 = ssub.s32 %s14, 1
      $region12: #{tpu_custom_call.1} parent=5 // pred_fallthru
        _
      %p123 = scmp.lt.s32.totalorder %s14, 2
      // Predicated region
      $region13: #{tpu_custom_call.1} parent=5 // pred_check
        %p124 = pneg %p123
      $region14: #{tpu_custom_call.1} parent=5 // pred_check_branch
        %126 = sbr.rel (%p124) target = $region16
      $region15: #{tpu_custom_call.1} parent=5 // pred_region
        // Predicated region
        $region17: #{tpu_custom_call.1} parent=15 // pred_check
          %p127 = pneg %p48
        $region18: #{tpu_custom_call.1} parent=15 // pred_check_branch
          %129 = sbr.rel (%p127) target = $region20
        $region19: #{tpu_custom_call.1} parent=15 // pred_region
          %s130 = sand.u32 %s38, 1
          %s131 = scalar_lea.sflag [#allocation3], %s130
          %s132 = sand.u32 %s38, 1
          %s133 = smul.addr %s132, 512
          %s134 = scalar_lea.vmem [#allocation2], %s133
          %s135 = smul.u32 8, %s21
          %s136 = smul.u32 8, %s22
          %138 = vsyncadd %s131, 0
          %s139 = smul.addr %s135, 8
          %s140 = sadd.s32 %s136, %s139
          %s141 = smul.addr %s140, 8
          %s142 = scalar_lea.hbm %s0, %s141
          %s143 = sshll.u32 %s142, 4
          %s144 = int_to_ptr.hbm [resolvable:$true] %s143
          %s145 = sshll.u32 %s134, 4
          %s146 = int_to_ptr.vmem [resolvable:$true] %s145
          %151 = dma.hbm_to_vmem [thread:$0]  %s144, 8192, %s146, %s131, 1024, 1024, 64
        $region20: #{tpu_custom_call.1} parent=15 // pred_fallthru
          _
        // Predicated region
        $region21: #{tpu_custom_call.1} parent=15 // pred_check
          %p152 = pneg %p74
        $region22: #{tpu_custom_call.1} parent=15 // pred_check_branch
          %154 = sbr.rel (%p152) target = $region24
        $region23: #{tpu_custom_call.1} parent=15 // pred_region
          %s155 = smul.u32 8, %s21
          %p156 = scmp.lt.s32.totalorder %s155, 15
          %s157 = scalar_select %p156, %s155, 15
          %s158 = smul.addr %s157, 8
          %s159 = scalar_lea.vmem %s1, %s158
          %s160 = smul.u32 8, %s21
        $region24: #{tpu_custom_call.1} parent=15 // pred_fallthru
          _
      $region16: #{tpu_custom_call.1} parent=5 // pred_fallthru
        _
      %p161 = scmp.le.s32.totalorder 1, %s14
      %p162 = scmp.lt.s32.totalorder %s14, 3
      %p163 = pnand %p161, %p162
      %p164 = pneg %p163
      // Predicated region
      $region25: #{tpu_custom_call.1} parent=5 // pred_check
        _
      $region26: #{tpu_custom_call.1} parent=5 // pred_check_branch
        %166 = sbr.rel (%p163) target = $region28
      $region27: #{tpu_custom_call.1} parent=5 // pred_region
        %s167 = ssub.s32 %s14, 1
        %s168 = sand.u32 %s41, 1
        %s169 = scalar_lea.sflag [#allocation3], %s168
        %s170 = sand.u32 %s41, 1
        %s171 = smul.addr %s170, 512
        %s172 = scalar_lea.vmem [#allocation2], %s171
        // Predicated region
        $region29: #{tpu_custom_call.1} parent=27 // pred_check
          %p173 = pneg %p54
        $region30: #{tpu_custom_call.1} parent=27 // pred_check_branch
          %175 = sbr.rel (%p173) target = $region32
        $region31: #{tpu_custom_call.1} parent=27 // pred_region
          %177 = dma.done %s169, 8192
        $region32: #{tpu_custom_call.1} parent=27 // pred_fallthru
          _
        %s178 = sand.u32 %s41, 1
        %s179 = scalar_lea.sflag [#allocation3], %s178
        %s180 = sand.u32 %s41, 1
        %s181 = smul.addr %s180, 512
        %s182 = scalar_lea.vmem [#allocation2], %s181
        %p183 = pneg %p54
        %p184 = pneg %p51
        %s185 = smul.u32 8, %s23
        %p186 = scmp.lt.s32.totalorder %s185, 15
        %s187 = scalar_select %p186, %s185, 15
        %s188 = smul.addr %s187, 8
        %s189 = scalar_lea.vmem %s1, %s188
        %p190 = pneg %p80
        %p191 = pneg %p77
        %p192 = pneg %p108
        %p193 = pneg %p105
        %s194 = sand.u32 %s95, 1
        %s195 = scalar_lea.sflag [#allocation4], %s194
        %s196 = sand.u32 %s95, 1
        %s197 = smul.addr %s196, 512
        %s198 = scalar_lea.vmem [#allocation5], %s197
        %s199 = smul.u32 8, %s23
        %s200 = smul.u32 8, %s24
        %s201 = smul.u32 8, %s23
        %p202 = scmp.lt.s32.totalorder %s201, 15
        %s203 = scalar_select %p202, %s201, 15
        %s204 = smul.addr %s203, 8
        %s205 = scalar_lea.vmem %s1, %s204
        %s206 = smul.u32 8, %s23
        %s207 = smul.u32 8, %s23
        %s208 = smul.u32 8, %s24
        %v209 = vld [vmem:[%s172] sm:$0xff]
        %v210 = vld [vmem:[%s172 + $0x8] sm:$0xff]
        %v211 = vld [vmem:[%s172 + $0x10] sm:$0xff]
        %v212 = vld [vmem:[%s172 + $0x18] sm:$0xff]
        %v213 = vld [vmem:[%s172 + $0x20] sm:$0xff]
        %v214 = vld [vmem:[%s172 + $0x28] sm:$0xff]
        %v215 = vld [vmem:[%s172 + $0x30] sm:$0xff]
        %v216 = vld [vmem:[%s172 + $0x38] sm:$0xff]
        %v217 = vld [vmem:[%s172 + $0x40] sm:$0xff]
        %v218 = vld [vmem:[%s172 + $0x48] sm:$0xff]
        %v219 = vld [vmem:[%s172 + $0x50] sm:$0xff]
        %v220 = vld [vmem:[%s172 + $0x58] sm:$0xff]
        %v221 = vld [vmem:[%s172 + $0x60] sm:$0xff]
        %v222 = vld [vmem:[%s172 + $0x68] sm:$0xff]
        %v223 = vld [vmem:[%s172 + $0x70] sm:$0xff]
        %v224 = vld [vmem:[%s172 + $0x78] sm:$0xff]
        %v225 = vld [vmem:[%s172 + $0x80] sm:$0xff]
        %v226 = vld [vmem:[%s172 + $0x88] sm:$0xff]
        %v227 = vld [vmem:[%s172 + $0x90] sm:$0xff]
        %v228 = vld [vmem:[%s172 + $0x98] sm:$0xff]
        %v229 = vld [vmem:[%s172 + $0xa0] sm:$0xff]
        %v230 = vld [vmem:[%s172 + $0xa8] sm:$0xff]
        %v231 = vld [vmem:[%s172 + $0xb0] sm:$0xff]
        %v232 = vld [vmem:[%s172 + $0xb8] sm:$0xff]
        %v233 = vld [vmem:[%s172 + $0xc0] sm:$0xff]
        %v234 = vld [vmem:[%s172 + $0xc8] sm:$0xff]
        %v235 = vld [vmem:[%s172 + $0xd0] sm:$0xff]
        %v236 = vld [vmem:[%s172 + $0xd8] sm:$0xff]
        %v237 = vld [vmem:[%s172 + $0xe0] sm:$0xff]
        %v238 = vld [vmem:[%s172 + $0xe8] sm:$0xff]
        %v239 = vld [vmem:[%s172 + $0xf0] sm:$0xff]
        %v240 = vld [vmem:[%s172 + $0xf8] sm:$0xff]
        %v241 = vld [vmem:[%s172 + $0x100] sm:$0xff]
        %v242 = vld [vmem:[%s172 + $0x108] sm:$0xff]
        %v243 = vld [vmem:[%s172 + $0x110] sm:$0xff]
        %v244 = vld [vmem:[%s172 + $0x118] sm:$0xff]
        %v245 = vld [vmem:[%s172 + $0x120] sm:$0xff]
        %v246 = vld [vmem:[%s172 + $0x128] sm:$0xff]
        %v247 = vld [vmem:[%s172 + $0x130] sm:$0xff]
        %v248 = vld [vmem:[%s172 + $0x138] sm:$0xff]
        %v249 = vld [vmem:[%s172 + $0x140] sm:$0xff]
        %v250 = vld [vmem:[%s172 + $0x148] sm:$0xff]
        %v251 = vld [vmem:[%s172 + $0x150] sm:$0xff]
        %v252 = vld [vmem:[%s172 + $0x158] sm:$0xff]
        %v253 = vld [vmem:[%s172 + $0x160] sm:$0xff]
        %v254 = vld [vmem:[%s172 + $0x168] sm:$0xff]
        %v255 = vld [vmem:[%s172 + $0x170] sm:$0xff]
        %v256 = vld [vmem:[%s172 + $0x178] sm:$0xff]
        %v257 = vld [vmem:[%s172 + $0x180] sm:$0xff]
        %v258 = vld [vmem:[%s172 + $0x188] sm:$0xff]
        %v259 = vld [vmem:[%s172 + $0x190] sm:$0xff]
        %v260 = vld [vmem:[%s172 + $0x198] sm:$0xff]
        %v261 = vld [vmem:[%s172 + $0x1a0] sm:$0xff]
        %v262 = vld [vmem:[%s172 + $0x1a8] sm:$0xff]
        %v263 = vld [vmem:[%s172 + $0x1b0] sm:$0xff]
        %v264 = vld [vmem:[%s172 + $0x1b8] sm:$0xff]
        %v265 = vld [vmem:[%s172 + $0x1c0] sm:$0xff]
        %v266 = vld [vmem:[%s172 + $0x1c8] sm:$0xff]
        %v267 = vld [vmem:[%s172 + $0x1d0] sm:$0xff]
        %v268 = vld [vmem:[%s172 + $0x1d8] sm:$0xff]
        %v269 = vld [vmem:[%s172 + $0x1e0] sm:$0xff]
        %v270 = vld [vmem:[%s172 + $0x1e8] sm:$0xff]
        %v271 = vld [vmem:[%s172 + $0x1f0] sm:$0xff]
        %v272 = vld [vmem:[%s172 + $0x1f8] sm:$0xff]
        %v273 = vld [vmem:[%s205] sm:$0xff]
        %v274 = vld [vmem:[%s205 + $0x8] sm:$0xff]
        %v275 = vld [vmem:[%s205 + $0x10] sm:$0xff]
        %v276 = vld [vmem:[%s205 + $0x18] sm:$0xff]
        %v277 = vld [vmem:[%s205 + $0x20] sm:$0xff]
        %v278 = vld [vmem:[%s205 + $0x28] sm:$0xff]
        %v279 = vld [vmem:[%s205 + $0x30] sm:$0xff]
        %v280 = vld [vmem:[%s205 + $0x38] sm:$0xff]
        %282 = vset.pattern.permute.xlu0 0
        %283 = vperm.xlu0 %282, %v273
        %v284 = vpop.permute.xlu0 %283
        %287 = vset.pattern.permute.xlu0 0
        %288 = vperm.xlu0 %287, %v274
        %v289 = vpop.permute.xlu0 %288
        %292 = vset.pattern.permute.xlu0 0
        %293 = vperm.xlu0 %292, %v275
        %v294 = vpop.permute.xlu0 %293
        %297 = vset.pattern.permute.xlu0 0
        %298 = vperm.xlu0 %297, %v276
        %v299 = vpop.permute.xlu0 %298
        %302 = vset.pattern.permute.xlu0 0
        %303 = vperm.xlu0 %302, %v277
        %v304 = vpop.permute.xlu0 %303
        %307 = vset.pattern.permute.xlu0 0
        %308 = vperm.xlu0 %307, %v278
        %v309 = vpop.permute.xlu0 %308
        %312 = vset.pattern.permute.xlu0 0
        %313 = vperm.xlu0 %312, %v279
        %v314 = vpop.permute.xlu0 %313
        %317 = vset.pattern.permute.xlu0 0
        %318 = vperm.xlu0 %317, %v280
        %v319 = vpop.permute.xlu0 %318
        %v321 = vadd.f32 %v209, %v284
        %v322 = vadd.f32 %v210, %v284
        %v323 = vadd.f32 %v211, %v284
        %v324 = vadd.f32 %v212, %v284
        %v325 = vadd.f32 %v213, %v284
        %v326 = vadd.f32 %v214, %v284
        %v327 = vadd.f32 %v215, %v284
        %v328 = vadd.f32 %v216, %v284
        %v329 = vadd.f32 %v217, %v289
        %v330 = vadd.f32 %v218, %v289
        %v331 = vadd.f32 %v219, %v289
        %v332 = vadd.f32 %v220, %v289
        %v333 = vadd.f32 %v221, %v289
        %v334 = vadd.f32 %v222, %v289
        %v335 = vadd.f32 %v223, %v289
        %v336 = vadd.f32 %v224, %v289
        %v337 = vadd.f32 %v225, %v294
        %v338 = vadd.f32 %v226, %v294
        %v339 = vadd.f32 %v227, %v294
        %v340 = vadd.f32 %v228, %v294
        %v341 = vadd.f32 %v229, %v294
        %v342 = vadd.f32 %v230, %v294
        %v343 = vadd.f32 %v231, %v294
        %v344 = vadd.f32 %v232, %v294
        %v345 = vadd.f32 %v233, %v299
        %v346 = vadd.f32 %v234, %v299
        %v347 = vadd.f32 %v235, %v299
        %v348 = vadd.f32 %v236, %v299
        %v349 = vadd.f32 %v237, %v299
        %v350 = vadd.f32 %v238, %v299
        %v351 = vadd.f32 %v239, %v299
        %v352 = vadd.f32 %v240, %v299
        %v353 = vadd.f32 %v241, %v304
        %v354 = vadd.f32 %v242, %v304
        %v355 = vadd.f32 %v243, %v304
        %v356 = vadd.f32 %v244, %v304
        %v357 = vadd.f32 %v245, %v304
        %v358 = vadd.f32 %v246, %v304
        %v359 = vadd.f32 %v247, %v304
        %v360 = vadd.f32 %v248, %v304
        %v361 = vadd.f32 %v249, %v309
        %v362 = vadd.f32 %v250, %v309
        %v363 = vadd.f32 %v251, %v309
        %v364 = vadd.f32 %v252, %v309
        %v365 = vadd.f32 %v253, %v309
        %v366 = vadd.f32 %v254, %v309
        %v367 = vadd.f32 %v255, %v309
        %v368 = vadd.f32 %v256, %v309
        %v369 = vadd.f32 %v257, %v314
        %v370 = vadd.f32 %v258, %v314
        %v371 = vadd.f32 %v259, %v314
        %v372 = vadd.f32 %v260, %v314
        %v373 = vadd.f32 %v261, %v314
        %v374 = vadd.f32 %v262, %v314
        %v375 = vadd.f32 %v263, %v314
        %v376 = vadd.f32 %v264, %v314
        %v377 = vadd.f32 %v265, %v319
        %v378 = vadd.f32 %v266, %v319
        %v379 = vadd.f32 %v267, %v319
        %v380 = vadd.f32 %v268, %v319
        %v381 = vadd.f32 %v269, %v319
        %v382 = vadd.f32 %v270, %v319
        %v383 = vadd.f32 %v271, %v319
        %v384 = vadd.f32 %v272, %v319
        %385 = vst [vmem:[%s198] sm:$0xff] %v321
        %386 = vst [vmem:[%s198 + $0x8] sm:$0xff] %v322
        %387 = vst [vmem:[%s198 + $0x10] sm:$0xff] %v323
        %388 = vst [vmem:[%s198 + $0x18] sm:$0xff] %v324
        %389 = vst [vmem:[%s198 + $0x20] sm:$0xff] %v325
        %390 = vst [vmem:[%s198 + $0x28] sm:$0xff] %v326
        %391 = vst [vmem:[%s198 + $0x30] sm:$0xff] %v327
        %392 = vst [vmem:[%s198 + $0x38] sm:$0xff] %v328
        %393 = vst [vmem:[%s198 + $0x40] sm:$0xff] %v329
        %394 = vst [vmem:[%s198 + $0x48] sm:$0xff] %v330
        %395 = vst [vmem:[%s198 + $0x50] sm:$0xff] %v331
        %396 = vst [vmem:[%s198 + $0x58] sm:$0xff] %v332
        %397 = vst [vmem:[%s198 + $0x60] sm:$0xff] %v333
        %398 = vst [vmem:[%s198 + $0x68] sm:$0xff] %v334
        %399 = vst [vmem:[%s198 + $0x70] sm:$0xff] %v335
        %400 = vst [vmem:[%s198 + $0x78] sm:$0xff] %v336
        %401 = vst [vmem:[%s198 + $0x80] sm:$0xff] %v337
        %402 = vst [vmem:[%s198 + $0x88] sm:$0xff] %v338
        %403 = vst [vmem:[%s198 + $0x90] sm:$0xff] %v339
        %404 = vst [vmem:[%s198 + $0x98] sm:$0xff] %v340
        %405 = vst [vmem:[%s198 + $0xa0] sm:$0xff] %v341
        %406 = vst [vmem:[%s198 + $0xa8] sm:$0xff] %v342
        %407 = vst [vmem:[%s198 + $0xb0] sm:$0xff] %v343
        %408 = vst [vmem:[%s198 + $0xb8] sm:$0xff] %v344
        %409 = vst [vmem:[%s198 + $0xc0] sm:$0xff] %v345
        %410 = vst [vmem:[%s198 + $0xc8] sm:$0xff] %v346
        %411 = vst [vmem:[%s198 + $0xd0] sm:$0xff] %v347
        %412 = vst [vmem:[%s198 + $0xd8] sm:$0xff] %v348
        %413 = vst [vmem:[%s198 + $0xe0] sm:$0xff] %v349
        %414 = vst [vmem:[%s198 + $0xe8] sm:$0xff] %v350
        %415 = vst [vmem:[%s198 + $0xf0] sm:$0xff] %v351
        %416 = vst [vmem:[%s198 + $0xf8] sm:$0xff] %v352
        %417 = vst [vmem:[%s198 + $0x100] sm:$0xff] %v353
        %418 = vst [vmem:[%s198 + $0x108] sm:$0xff] %v354
        %419 = vst [vmem:[%s198 + $0x110] sm:$0xff] %v355
        %420 = vst [vmem:[%s198 + $0x118] sm:$0xff] %v356
        %421 = vst [vmem:[%s198 + $0x120] sm:$0xff] %v357
        %422 = vst [vmem:[%s198 + $0x128] sm:$0xff] %v358
        %423 = vst [vmem:[%s198 + $0x130] sm:$0xff] %v359
        %424 = vst [vmem:[%s198 + $0x138] sm:$0xff] %v360
        %425 = vst [vmem:[%s198 + $0x140] sm:$0xff] %v361
        %426 = vst [vmem:[%s198 + $0x148] sm:$0xff] %v362
        %427 = vst [vmem:[%s198 + $0x150] sm:$0xff] %v363
        %428 = vst [vmem:[%s198 + $0x158] sm:$0xff] %v364
        %429 = vst [vmem:[%s198 + $0x160] sm:$0xff] %v365
        %430 = vst [vmem:[%s198 + $0x168] sm:$0xff] %v366
        %431 = vst [vmem:[%s198 + $0x170] sm:$0xff] %v367
        %432 = vst [vmem:[%s198 + $0x178] sm:$0xff] %v368
        %433 = vst [vmem:[%s198 + $0x180] sm:$0xff] %v369
        %434 = vst [vmem:[%s198 + $0x188] sm:$0xff] %v370
        %435 = vst [vmem:[%s198 + $0x190] sm:$0xff] %v371
        %436 = vst [vmem:[%s198 + $0x198] sm:$0xff] %v372
        %437 = vst [vmem:[%s198 + $0x1a0] sm:$0xff] %v373
        %438 = vst [vmem:[%s198 + $0x1a8] sm:$0xff] %v374
        %439 = vst [vmem:[%s198 + $0x1b0] sm:$0xff] %v375
        %440 = vst [vmem:[%s198 + $0x1b8] sm:$0xff] %v376
        %441 = vst [vmem:[%s198 + $0x1c0] sm:$0xff] %v377
        %442 = vst [vmem:[%s198 + $0x1c8] sm:$0xff] %v378
        %443 = vst [vmem:[%s198 + $0x1d0] sm:$0xff] %v379
        %444 = vst [vmem:[%s198 + $0x1d8] sm:$0xff] %v380
        %445 = vst [vmem:[%s198 + $0x1e0] sm:$0xff] %v381
        %446 = vst [vmem:[%s198 + $0x1e8] sm:$0xff] %v382
        %447 = vst [vmem:[%s198 + $0x1f0] sm:$0xff] %v383
        %448 = vst [vmem:[%s198 + $0x1f8] sm:$0xff] %v384
        %s449 = sand.u32 %s95, 1
        %s450 = scalar_lea.sflag [#allocation4], %s449
        %s451 = sand.u32 %s95, 1
        %s452 = smul.addr %s451, 512
        %s453 = scalar_lea.vmem [#allocation5], %s452
        // Predicated region
        $region33: #{tpu_custom_call.1} parent=27 // pred_check
          %p454 = pneg %p105
        $region34: #{tpu_custom_call.1} parent=27 // pred_check_branch
          %456 = sbr.rel (%p454) target = $region36
        $region35: #{tpu_custom_call.1} parent=27 // pred_region
          %s457 = smul.u32 8, %s23
          %s458 = smul.u32 8, %s24
          %460 = vsyncadd %s450, 0
          %s461 = smul.addr %s457, 8
          %s462 = sadd.s32 %s458, %s461
          %s463 = smul.addr %s462, 8
          %s464 = scalar_lea.hbm %s2, %s463
          %s465 = sshll.u32 %s453, 4
          %s466 = int_to_ptr.vmem [resolvable:$true] %s465
          %s467 = sshll.u32 %s464, 4
          %s468 = int_to_ptr.hbm [resolvable:$true] %s467
          %473 = dma.vmem_to_hbm [thread:$0]  %s466, 8192, %s468, %s450, 1024, 1024, 64
        $region36: #{tpu_custom_call.1} parent=27 // pred_fallthru
          _
      $region28: #{tpu_custom_call.1} parent=5 // pred_fallthru
        _
      %p474 = scmp.le.s32.totalorder 2, %s14
      // Predicated region
      $region37: #{tpu_custom_call.1} parent=5 // pred_check
        %p475 = pneg %p474
      $region38: #{tpu_custom_call.1} parent=5 // pred_check_branch
        %477 = sbr.rel (%p475) target = $region40
      $region39: #{tpu_custom_call.1} parent=5 // pred_region
        %s478 = ssub.s32 %s14, 2
        // Predicated region
        $region41: #{tpu_custom_call.1} parent=39 // pred_check
          %p479 = pneg %p111
        $region42: #{tpu_custom_call.1} parent=39 // pred_check_branch
          %481 = sbr.rel (%p479) target = $region44
        $region43: #{tpu_custom_call.1} parent=39 // pred_region
          %s482 = sand.u32 %s96, 1
          %s483 = scalar_lea.sflag [#allocation4], %s482
          %s484 = sand.u32 %s96, 1
          %s485 = smul.addr %s484, 512
          %s486 = scalar_lea.vmem [#allocation5], %s485
          %488 = dma.done %s483, 8192
        $region44: #{tpu_custom_call.1} parent=39 // pred_fallthru
          _
      $region40: #{tpu_custom_call.1} parent=5 // pred_fallthru
        _
    $region6: #{tpu_custom_call.1} parent=1 // loop_footer
      %s18 = sadd.s32 1, %s14
    $region7: #{tpu_custom_call.1} parent=1 // loop_footer_branch
      %13 = sbr.rel target = $region3
    $region8: #{tpu_custom_call.1} parent=1 // loop_exit
      _
    %489 = vsyncpa [#allocation3], 1
    %s490 = scalar_lea.sflag [#allocation3], 1
    %491 = vsyncpa %s490, 1
    %492 = vsyncpa [#allocation4], 1
    %s493 = scalar_lea.sflag [#allocation4], 1
    %494 = vsyncpa %s493, 1

</llo_original>
